<compile_context>
chip_gen: v5e
topology: v5e:2x2
jax: 0.10.0
libtpu: 0.0.40
codegen_flags: <defaults>
</compile_context>

<pallas_src>
import math
from functools import partial

import jax
import jax.numpy as jnp
from jax.experimental import pallas as pl
from jax.experimental.pallas import tpu as pltpu


def _round_up(n, m):
    return ((n + m - 1) // m) * m


def quantum_layer_kernel(x_ref, wcat_ref, b_ref, mb_ref, out_ref):
    """One batch tile.

    x_ref    : (TB, D_in)            bf16   streamed per grid step
    wcat_ref : (D_in, D_out + 2*Q)   bf16   resident  [W_lin | Wr_eff | Wi_eff]
    b_ref    : (1, D_out)            f32    resident
    mb_ref   : (Q, D_out)            f32    resident  (measurement basis)
    out_ref  : (TB, D_out + Q)       f32    [fused | probs] slab
    """
    d_out = b_ref.shape[1]
    q_dim = mb_ref.shape[0]

    # Single wide MXU matmul replaces the linear / superposition / evolution /
    # entanglement matmuls of the reference (chain folded on the host).
    y = jnp.dot(x_ref[...], wcat_ref[...], preferred_element_type=jnp.float32)

    # classical path: tanh(x @ W_lin + b)
    classical = jnp.tanh(y[:, :d_out] + b_ref[...])            # (TB, D_out)

    # quantum path: real / imag of the entangled state (input state was real)
    ent_r = y[:, d_out:d_out + q_dim]                          # (TB, Q)
    ent_i = y[:, d_out + q_dim:]                               # (TB, Q)

    # measurement: |z|^2
    probs = ent_r * ent_r + ent_i * ent_i                      # (TB, Q)

    # projection to output space (K = Q is tiny; negligible next to the
    # streaming matmul above, so the MXU call is fine here)
    q_out = jnp.dot(probs, mb_ref[...], preferred_element_type=jnp.float32)

    # fusion weight: sigmoid(mean over quantum dim)
    fw = jax.nn.sigmoid(jnp.mean(probs, axis=1, keepdims=True))  # (TB, 1)
    fused = fw * q_out + (1.0 - fw) * classical                  # (TB, D_out)

    # one lane-contiguous store of the [fused | probs] slab
    out_ref[...] = jnp.concatenate([fused, probs], axis=1)


@partial(jax.jit, static_argnames=("block_b",))
def quantum_inspired_layer(x, w_lin, b_lin, sg, qw_r, qw_i, ent, mb, *, block_b=None):
    """x: (B, input_dim) f32.  Returns (fused (B, output_dim), probs (B, Q)).

    w_lin is expected in (input_dim, output_dim) layout (torch weight.T).
    """
    B, d_in = x.shape
    d_out = w_lin.shape[1]
    q_dim = sg.shape[1]

    # --- host-side prep (in production: precompute once per weight update) ---
    wr_eff = (sg @ qw_r) @ ent                                  # (D_in, Q)
    wi_eff = (sg @ qw_i) @ ent                                  # (D_in, Q)
    w_cat = jnp.concatenate([w_lin, wr_eff, wi_eff], axis=1).astype(jnp.bfloat16)
    bias = b_lin.reshape(1, d_out).astype(jnp.float32)
    mb_f32 = mb.astype(jnp.float32)

    # --- batch tiling ---------------------------------------------------------
    if block_b is None:
        # large (128-multiple) tiles for real batches; minimal sublane-aligned
        # tile for tiny ones.  Halve explicitly via block_b= for v7x if VMEM
        # ever becomes the limit (it is nowhere close at these feature dims).
        block_b = min(1024, _round_up(B, 128)) if B > 64 else _round_up(B, 8)
    b_pad = _round_up(B, block_b)
    nb = b_pad // block_b

    x_b = x.astype(jnp.bfloat16)
    if b_pad != B:
        x_b = jnp.pad(x_b, ((0, b_pad - B), (0, 0)))            # zero rows -> no NaNs

    out = pl.pallas_call(
        quantum_layer_kernel,
        out_shape=jax.ShapeDtypeStruct((b_pad, d_out + q_dim), jnp.float32),
        grid_spec=pltpu.PrefetchScalarGridSpec(
            num_scalar_prefetch=0,
            grid=(nb,),
            in_specs=[
                pl.BlockSpec((block_b, d_in), lambda i: (i, 0)),          # x: streams
                pl.BlockSpec((d_in, d_out + 2 * q_dim), lambda i: (0, 0)),  # W_cat: resident
                pl.BlockSpec((1, d_out), lambda i: (0, 0)),               # bias: resident
                pl.BlockSpec((q_dim, d_out), lambda i: (0, 0)),           # mb: resident
            ],
            out_specs=pl.BlockSpec((block_b, d_out + q_dim), lambda i: (i, 0)),
        ),
        compiler_params=pltpu.CompilerParams(
            dimension_semantics=("parallel",),          # shard batch axis across TCs (v7x)
            vmem_limit_bytes=32 * 1024 * 1024,
        ),
    )(x_b, w_cat, bias, mb_f32)

    fused = out[:B, :d_out]
    probs = out[:B, d_out:]
    return fused, probs


def _reference(x, w_lin, b_lin, sg, qw_r, qw_i, ent, mb):
    """Pure-JAX f32/complex64 reference for a sanity check."""
    classical = jnp.tanh(x @ w_lin + b_lin)
    q = x @ sg
    qe = q.astype(jnp.complex64) @ (qw_r + 1j * qw_i)
    es = qe @ ent.astype(jnp.complex64)
    probs = jnp.abs(es) ** 2
    q_out = probs @ mb
    fw = jax.nn.sigmoid(jnp.mean(probs, axis=1, keepdims=True))
    return fw * q_out + (1.0 - fw) * classical, probs


if __name__ == "__main__":
    B, input_dim, output_dim, Q = 2, 32, 16, 8

    key = jax.random.PRNGKey(0)
    k = jax.random.split(key, 8)

    # nn.Linear default init: U(-1/sqrt(in), 1/sqrt(in)); weight stored (in, out)
    lim = 1.0 / math.sqrt(input_dim)
    w_lin = jax.random.uniform(k[0], (input_dim, output_dim),
                               minval=-lim, maxval=lim, dtype=jnp.float32)
    b_lin = jax.random.uniform(k[1], (1, output_dim),
                               minval=-lim, maxval=lim, dtype=jnp.float32)
    # quantum params: standard normal (as torch.randn)
    qw_r = jax.random.normal(k[2], (Q, Q), dtype=jnp.float32)
    qw_i = jax.random.normal(k[3], (Q, Q), dtype=jnp.float32)
    sg   = jax.random.normal(k[4], (input_dim, Q), dtype=jnp.float32)
    ent  = jax.random.normal(k[5], (Q, Q), dtype=jnp.float32)
    mb   = jax.random.normal(k[6], (Q, output_dim), dtype=jnp.float32)

    x = jax.random.normal(k[7], (B, input_dim), dtype=jnp.float32)

    fused, probs = quantum_inspired_layer(x, w_lin, b_lin, sg, qw_r, qw_i, ent, mb)
    jax.block_until_ready((fused, probs))

    # sanity check vs f32 complex reference (bf16 matmul inputs -> loosened tol)
    ref_fused, ref_probs = _reference(x, w_lin, b_lin, sg, qw_r, qw_i, ent, mb)
    assert fused.shape == (B, output_dim) and probs.shape == (B, Q)

    def _rel(a, b):
        return float(jnp.linalg.norm(a - b) / (jnp.linalg.norm(b) + 1e-12))

    assert _rel(fused, ref_fused) < 5e-2, f"fused rel err {_rel(fused, ref_fused)}"
    assert _rel(probs, ref_probs) < 5e-2, f"probs rel err {_rel(probs, ref_probs)}"

    print("KERNEL_OK")
</pallas_src>

<mosaic_0001>
module attributes {stable_mosaic.version = 11 : i64} {
  func.func @quantum_layer_kernel(%arg0: i32, %arg1: memref<8x32xbf16, #tpu.memory_space<vmem>>, %arg2: memref<32x32xbf16, #tpu.memory_space<vmem>>, %arg3: memref<1x16xf32, #tpu.memory_space<vmem>>, %arg4: memref<8x16xf32, #tpu.memory_space<vmem>>, %arg5: memref<8x24xf32, #tpu.memory_space<vmem>>) attributes {dimension_semantics = [#tpu.dimension_semantics<parallel>], iteration_bounds = array<i64: 1>, scalar_prefetch = 0 : i64, scratch_operands = 0 : i64, tpu.core_type = #tpu.core_type<tc>, window_params = [{transform_indices = @transform_0, window_bounds = array<i64: 8, 32>}, {pipeline_mode = #tpu.pipeline_mode<synchronous>, transform_indices = @transform_1, window_bounds = array<i64: 32, 32>}, {pipeline_mode = #tpu.pipeline_mode<synchronous>, transform_indices = @transform_2, window_bounds = array<i64: 1, 16>}, {pipeline_mode = #tpu.pipeline_mode<synchronous>, transform_indices = @transform_3, window_bounds = array<i64: 8, 16>}, {transform_indices = @transform_4, window_bounds = array<i64: 8, 24>}]} {
    %c0 = arith.constant 0 : index
    %c0_0 = arith.constant 0 : index
    %0 = vector.load %arg1[%c0, %c0_0] : memref<8x32xbf16, #tpu.memory_space<vmem>>, vector<8x32xbf16>
    %c0_1 = arith.constant 0 : index
    %c0_2 = arith.constant 0 : index
    %1 = vector.load %arg2[%c0_1, %c0_2] : memref<32x32xbf16, #tpu.memory_space<vmem>>, vector<32x32xbf16>
    %cst = arith.constant dense<0.000000e+00> : vector<8x32xf32>
    %2 = tpu.matmul %0, %1, %cst {dimension_numbers = #tpu.dot_dimension_numbers<[1], [0], [0], [1], [0, 0, 1, 1], [], []>} : vector<8x32xbf16>, vector<32x32xbf16>, vector<8x32xf32> -> vector<8x32xf32>
    %3 = vector.extract_strided_slice %2 {offsets = [0, 0], sizes = [8, 16], strides = [1, 1]} : vector<8x32xf32> to vector<8x16xf32>
    %c0_3 = arith.constant 0 : index
    %c0_4 = arith.constant 0 : index
    %4 = vector.load %arg3[%c0_3, %c0_4] : memref<1x16xf32, #tpu.memory_space<vmem>>, vector<1x16xf32>
    %5 = vector.broadcast %4 : vector<1x16xf32> to vector<8x16xf32>
    %6 = arith.addf %3, %5 : vector<8x16xf32>
    %7 = math.tanh %6 : vector<8x16xf32>
    %8 = vector.extract_strided_slice %2 {offsets = [0, 16], sizes = [8, 8], strides = [1, 1]} : vector<8x32xf32> to vector<8x8xf32>
    %9 = vector.extract_strided_slice %2 {offsets = [0, 24], sizes = [8, 8], strides = [1, 1]} : vector<8x32xf32> to vector<8x8xf32>
    %10 = arith.mulf %8, %8 : vector<8x8xf32>
    %11 = arith.mulf %9, %9 : vector<8x8xf32>
    %12 = arith.addf %10, %11 : vector<8x8xf32>
    %c0_5 = arith.constant 0 : index
    %c0_6 = arith.constant 0 : index
    %13 = vector.load %arg4[%c0_5, %c0_6] : memref<8x16xf32, #tpu.memory_space<vmem>>, vector<8x16xf32>
    %cst_7 = arith.constant dense<0.000000e+00> : vector<8x16xf32>
    %14 = tpu.matmul %12, %13, %cst_7 {dimension_numbers = #tpu.dot_dimension_numbers<[1], [0], [0], [1], [0, 0, 1, 1], [], []>} : vector<8x8xf32>, vector<8x16xf32>, vector<8x16xf32> -> vector<8x16xf32>
    %cst_8 = arith.constant dense<0.000000e+00> : vector<8xf32>
    %15 = vector.multi_reduction <add>, %12, %cst_8 [1] : vector<8x8xf32> to vector<8xf32>
    %16 = vector.shape_cast %15 : vector<8xf32> to vector<8x1xf32>
    %cst_9 = arith.constant 8.000000e+00 : f32
    %17 = vector.broadcast %cst_9 : f32 to vector<8x1xf32>
    %18 = arith.divf %16, %17 : vector<8x1xf32>
    %19 = arith.negf %18 : vector<8x1xf32>
    %20 = math.exp %19 : vector<8x1xf32>
    %cst_10 = arith.constant 1.000000e+00 : f32
    %21 = vector.broadcast %cst_10 : f32 to vector<8x1xf32>
    %22 = arith.addf %21, %20 : vector<8x1xf32>
    %23 = arith.divf %21, %22 : vector<8x1xf32>
    %24 = vector.broadcast %23 : vector<8x1xf32> to vector<8x16xf32>
    %25 = arith.mulf %24, %14 : vector<8x16xf32>
    %cst_11 = arith.constant 1.000000e+00 : f32
    %26 = vector.broadcast %cst_11 : f32 to vector<8x1xf32>
    %27 = arith.subf %26, %23 : vector<8x1xf32>
    %28 = vector.broadcast %27 : vector<8x1xf32> to vector<8x16xf32>
    %29 = arith.mulf %28, %7 : vector<8x16xf32>
    %30 = arith.addf %25, %29 : vector<8x16xf32>
    %31 = tpu.concatenate %30, %12 in 1 : vector<8x16xf32>, vector<8x8xf32> -> vector<8x24xf32>
    %c0_12 = arith.constant 0 : index
    %c0_13 = arith.constant 0 : index
    %32 = vector.load %arg5[%c0_12, %c0_13] : memref<8x24xf32, #tpu.memory_space<vmem>>, vector<8x24xf32>
    tpu.vector_store %arg5[%c0_12, %c0_13], %31 {strides = array<i32>} : memref<8x24xf32, #tpu.memory_space<vmem>>, vector<8x24xf32>,
    return
  }
  func.func @transform_0(%arg0: i32) -> (i32, i32) {
    %c0_i32 = arith.constant 0 : i32
    %c0_i32_0 = arith.constant 0 : i32
    return %arg0, %c0_i32 : i32, i32
  }
  func.func @transform_1(%arg0: i32) -> (i32, i32) {
    %c0_i32 = arith.constant 0 : i32
    %c0_i32_0 = arith.constant 0 : i32
    %c0_i32_1 = arith.constant 0 : i32
    return %c0_i32, %c0_i32_0 : i32, i32
  }
  func.func @transform_2(%arg0: i32) -> (i32, i32) {
    %c0_i32 = arith.constant 0 : i32
    %c0_i32_0 = arith.constant 0 : i32
    %c0_i32_1 = arith.constant 0 : i32
    return %c0_i32, %c0_i32_0 : i32, i32
  }
  func.func @transform_3(%arg0: i32) -> (i32, i32) {
    %c0_i32 = arith.constant 0 : i32
    %c0_i32_0 = arith.constant 0 : i32
    %c0_i32_1 = arith.constant 0 : i32
    return %c0_i32, %c0_i32_0 : i32, i32
  }
  func.func @transform_4(%arg0: i32) -> (i32, i32) {
    %c0_i32 = arith.constant 0 : i32
    %c0_i32_0 = arith.constant 0 : i32
    return %arg0, %c0_i32 : i32, i32
  }
}

</mosaic_0001>

<llo_original>
// kernel: quantum_inspired_layer.1
$region0: #{quantum_inspired_layer.1}
  #allocation0 [shape = 'u32[]', space=smem, size = 0x4, offset = 0x4, fixed_abs, tag = 'smem constant byte address 0x4 - core index']
  #allocation1 [shape = 'u32[72,128]{1,0:T(1,128)}', space=vmem, size = 0x9000, scoped, tag = 'internal scratch']
  %s0 = inlined_call_operand.vmem [shape: bf16[8,32], index: 0, kind: input, shape index: {}]
  %s1 = inlined_call_operand.vmem [shape: bf16[32,32], index: 1, kind: input, shape index: {}]
  %s2 = inlined_call_operand.vmem [shape: f32[1,16], index: 2, kind: input, shape index: {}]
  %s3 = inlined_call_operand.vmem [shape: f32[8,16], index: 3, kind: input, shape index: {}]
  %s4 = inlined_call_operand.vmem [shape: f32[8,24], index: 4, kind: output, shape index: {}]
  %s5 = sld [smem:[#allocation0]]
  $region26: #{quantum_inspired_layer.1} parent=0
    _
  %s7 = ssub.s32 1, %s5
  %s8 = scalar_select 0, %s7, %s5
  // Predicated region
  $region2: #{quantum_inspired_layer.1} parent=0 // pred_check
    _
  $region3: #{quantum_inspired_layer.1} parent=0 // pred_check_branch
    %10 = sbr.rel (0) target = $region5
  $region4: #{quantum_inspired_layer.1} parent=0 // pred_region
    _
  $region5: #{quantum_inspired_layer.1} parent=0 // pred_fallthru
    _
  // Predicated region
  $region6: #{quantum_inspired_layer.1} parent=0 // pred_check
    _
  $region7: #{quantum_inspired_layer.1} parent=0 // pred_check_branch
    %12 = sbr.rel (0) target = $region9
  $region8: #{quantum_inspired_layer.1} parent=0 // pred_region
    _
  $region9: #{quantum_inspired_layer.1} parent=0 // pred_fallthru
    _
  // Predicated region
  $region10: #{quantum_inspired_layer.1} parent=0 // pred_check
    _
  $region11: #{quantum_inspired_layer.1} parent=0 // pred_check_branch
    %14 = sbr.rel (0) target = $region13
  $region12: #{quantum_inspired_layer.1} parent=0 // pred_region
    _
  $region13: #{quantum_inspired_layer.1} parent=0 // pred_fallthru
    _
  // Predicated region
  $region14: #{quantum_inspired_layer.1} parent=0 // pred_check
    _
  $region15: #{quantum_inspired_layer.1} parent=0 // pred_check_branch
    %16 = sbr.rel (0) target = $region17
  $region16: #{quantum_inspired_layer.1} parent=0 // pred_region
    _
  $region17: #{quantum_inspired_layer.1} parent=0 // pred_fallthru
    _
  %v18 = vld [vmem:[%s0] sm:$0xf]
  %v19 = vld [vmem:[%s1] sm:$0xf]
  %v20 = vld [vmem:[%s1 + $0x4] sm:$0xf]
  %v21 = vld [vmem:[%s1 + $0x8] sm:$0xf]
  %v22 = vld [vmem:[%s1 + $0xc] sm:$0xf]
  %v27 = vunpack.c.l.b16 %v19
  %v28 = vunpack.c.l.b16 %v20
  %v29 = vunpack.c.l.b16 %v21
  %v30 = vunpack.c.l.b16 %v22
  %v31 = vpack.c.b16 %v28, %v27
  %v32 = vpack.c.b16 %v30, %v29
  %vm35 = vcmask 261120
  %v37 = vsel %vm35, %v18, 0
  %39 = vmatpush.bf16.msra.mxu0 0
  %40 = vmatpush.bf16.msra.mxu0 0
  %41 = vmatpush.bf16.msra.mxu0 0
  %42 = vmatpush.bf16.msra.mxu0 0
  %43 = vmatpush.bf16.msra.mxu0 0
  %44 = vmatpush.bf16.msra.mxu0 0
  %45 = vmatpush.bf16.msra.mxu0 %v32
  %46 = vmatpush.bf16.msra.mxu0 %v31
  %47 = vmatmul.bf16.gmra.mxu0 %v37
  %v48 = vpop.f32.mrf.mxu0
  %v49 = vadd.f32 0.0, %v48
  %v50 = vpop.f32.mrf.mxu0
  %51 = vdwg.mxu0
  %v52 = vld [vmem:[%s2] sm:$0x1]
  %v54 = vperm.slane %v52, 0
  %v56 = vadd.f32 %v49, %v54
  %v57 = vtanh.pop %v56
  %v58 = vmul.f32 %v49, %v49
  %60 = vrot.lane.b32.xlu0 %v58, 120
  %v61 = vpop.permute.xlu0 %60
  %v63 = vadd.f32 %v58, %v61
  %v64 = vld [vmem:[%s3] sm:$0xff]
  %66 = vrot.lane.b32.xlu0 %v63, 112
  %v67 = vpop.permute.xlu0 %66
  %vm68 = vcmask 64512
  %v69 = vsel %vm68, %v67, 0
  %71 = vmatpush.msra.mxu0 0.0
  %72 = vmatpush.msra.mxu0 0.0
  %73 = vmatpush.msra.mxu0 0.0
  %74 = vmatpush.msra.mxu0 0.0
  %75 = vmatpush.msra.mxu0 0.0
  %76 = vmatpush.msra.mxu0 0.0
  %77 = vmatpush.msra.mxu0 0.0
  %78 = vmatpush.msra.mxu0 0.0
  %79 = vmatpush.msra.mxu0 0.0
  %80 = vmatpush.msra.mxu0 0.0
  %81 = vmatpush.msra.mxu0 0.0
  %82 = vmatpush.msra.mxu0 0.0
  %83 = vmatpush.msra.mxu0 0.0
  %84 = vmatpush.msra.mxu0 0.0
  %85 = vmatpush.msra.mxu0 0.0
  %86 = vmatpush.msra.mxu0 %v64
  %87 = vmatmul.f32.gmra.mxu0 %v69
  %v88 = vpop.f32.mrf.mxu0
  %v89 = vadd.f32 0.0, %v88
  %90 = vdwg.mxu0
  %v92 = vsel %vm68, %v67, 0.0
  %93 = vadd.xlane.f32.xlu0 %v92
  %v94 = vpop.xlane.xlu0 %93
  %v95 = vrcp.pop 8.0
  %v96 = vmul.f32 8.0, %v95
  %v97 = vsub.f32 1.0, %v96
  %v98 = vmul.f32 %v95, %v97
  %v99 = vadd.f32 %v95, %v98
  %vm100 = vweird.f32 %v95
  %v101 = vsel %vm100, %v95, %v99
  %v102 = vmul.f32 %v94, %v101
  %v103 = vxor.u32 %v102, 2147483648
  %v104 = vmul.f32 %v103, 1.442695
  %v105 = vpow.pop %v104
  %v106 = vadd.f32 %v105, 1.0
  %v107 = vrcp.pop %v106
  %v108 = vmul.f32 %v106, %v107
  %v109 = vsub.f32 1.0, %v108
  %v110 = vmul.f32 %v107, %v109
  %v111 = vadd.f32 %v107, %v110
  %vm112 = vweird.f32 %v106
  %vm113 = vweird.f32 %v107
  %vm114 = vmor %vm112, %vm113
  %v115 = vsel %vm114, %v107, %v111
  %v116 = vand.u32 2147483647, %v106
  %vm117 = vcmp.eq.f32.partialorder %v116, 8.507059e+37
  %v118 = vand.u32 %v106, 2147483648
  %v119 = vor.u32 1.1754944e-38, %v118
  %v120 = vsel %vm117, %v119, %v115
  %v121 = vmul.f32 1.0, %v120
  %v122 = vmul.f32 %v121, %v89
  %v123 = vsub.f32 1.0, %v121
  %v124 = vmul.f32 %v123, %v57
  %v125 = vadd.f32 %v122, %v124
  %vm126 = vcmask 130048
  %v127 = vsel %vm126, %v125, %v63
  %vm128 = vcmask 195584
  %129 = vst.msk [vmem:[%s4] sm:$0xff] %vm128, %v127
  // Predicated region
  $region18: #{quantum_inspired_layer.1} parent=0 // pred_check
    _
  $region19: #{quantum_inspired_layer.1} parent=0 // pred_check_branch
    %131 = sbr.rel (0) target = $region21
  $region20: #{quantum_inspired_layer.1} parent=0 // pred_region
    _
  $region21: #{quantum_inspired_layer.1} parent=0 // pred_fallthru
    _
  // Predicated region
  $region22: #{quantum_inspired_layer.1} parent=0 // pred_check
    _
  $region23: #{quantum_inspired_layer.1} parent=0 // pred_check_branch
    %133 = sbr.rel (0) target = $region25
  $region24: #{quantum_inspired_layer.1} parent=0 // pred_region
    _
  $region25: #{quantum_inspired_layer.1} parent=0 // pred_fallthru
    _

</llo_original>
